<compile_context>
chip_gen: v6e
topology: v6e:2x2x1
jax: 0.10.0
libtpu: 0.0.40
codegen_flags: <defaults>
</compile_context>

<pallas_src>
import jax
import jax.numpy as jnp
from jax import lax
from jax.experimental import pallas as pl
from jax.experimental.pallas import tpu as pltpu


_STRIP = 8          # sublane strip: one f32 vreg worth of rows
_LANE_CHUNK = 1024  # lanes processed per inner step (8 f32 vregs live)


def _round_up(x: int, m: int) -> int:
    return -(-x // m) * m


def _alibi_kernel(slopes_ref, out_ref):
    """One q-tile of the ALiBi bias for all heads.

    slopes_ref: SMEM ref [H] f32 — positive magnitudes 2**-(8-h).
    out_ref:    VMEM ref [H, TQ, TK] f32 (TK == full seq_len).
    """
    num_heads, tq, tk = out_ref.shape
    qi = pl.program_id(0)
    row_base = qi * tq  # global row index of this block's first row

    # Static lane-chunk boundaries (tk is a Python int inside the kernel).
    chunk_starts = list(range(0, tk, _LANE_CHUNK))
    full_w = min(_LANE_CHUNK, tk)

    # (lane - sublane) pattern for a full-width chunk; reused by every strip.
    base_delta_full = (
        lax.broadcasted_iota(jnp.int32, (_STRIP, full_w), 1)
        - lax.broadcasted_iota(jnp.int32, (_STRIP, full_w), 0)
    )

    n_strips = tq // _STRIP  # tq is always a multiple of _STRIP

    def strip_body(s, carry):
        row0 = pl.multiple_of(s * _STRIP, _STRIP)
        g_row0 = row_base + row0  # global row of this strip's first row
        for c0 in chunk_starts:
            cw = min(_LANE_CHUNK, tk - c0)
            if cw == full_w:
                base_delta = base_delta_full
            else:  # ragged lane tail (static size, at most one per kernel)
                base_delta = (
                    lax.broadcasted_iota(jnp.int32, (_STRIP, cw), 1)
                    - lax.broadcasted_iota(jnp.int32, (_STRIP, cw), 0)
                )
            # delta = col - row = (c0 + lane) - (g_row0 + sublane)
            dist = jnp.abs(base_delta + (c0 - g_row0)).astype(jnp.float32)
            # torch: (-|i-j|) * (-2**-(8-h)) == |i-j| * 2**-(8-h)
            for h in range(num_heads):
                out_ref[h, pl.ds(row0, _STRIP), c0:c0 + cw] = dist * slopes_ref[h]
        return carry

    lax.fori_loop(0, n_strips, strip_body, 0, unroll=False)


def _pick_tiles(seq_len: int, num_heads: int, max_block_bytes: int):
    """Pick (tq, tk): full-seq lane dim, sublane dim sized to the block budget."""
    tk = seq_len                       # full lane extent -> contiguous writeback
    tk_pad = _round_up(tk, 128)        # account for VMEM lane padding
    bytes_per_row = num_heads * tk_pad * 4

    row_budget = max(_STRIP, (max_block_bytes // bytes_per_row) // _STRIP * _STRIP)

    # Keep >= 2 grid steps whenever the sequence can be split, so v7x can
    # shard the (parallel) q-tile axis across its 2 TensorCores.
    half = _round_up(_round_up(seq_len, 2) // 2, _STRIP)
    tq_cap = half if half < seq_len else _round_up(seq_len, _STRIP)

    tq = max(_STRIP, min(row_budget, tq_cap))
    return tq, tk


def alibi_bias(
    seq_len: int,
    num_heads: int,
    *,
    max_block_bytes: int = 8 * 1024 * 1024,
) -> jax.Array:
    """ALiBi bias of shape [1, num_heads, seq_len, seq_len] (float32)."""
    # Positive slope magnitudes (negation folded with the -|i-j| negation).
    pos_slopes = jnp.asarray(
        [2.0 ** (-(8 - i)) for i in range(num_heads)], dtype=jnp.float32
    )

    tq, tk = _pick_tiles(seq_len, num_heads, max_block_bytes)
    grid = (pl.cdiv(seq_len, tq),)

    # Generation-aware scoped-VMEM budget: double-buffered output block + margin.
    tk_pad = _round_up(tk, 128)
    block_bytes = num_heads * tq * tk_pad * 4
    vmem_limit = int(2 * block_bytes + (8 << 20))

    out = pl.pallas_call(
        _alibi_kernel,
        out_shape=jax.ShapeDtypeStruct(
            (1, num_heads, seq_len, seq_len), jnp.float32
        ),
        grid_spec=pl.GridSpec(
            grid=grid,
            # Slopes live whole in SMEM (tiny, scalar-indexed per head).
            in_specs=[pl.BlockSpec(memory_space=pltpu.SMEM)],
            # Leading batch dim (size 1) squeezed; heads folded into one block;
            # lane dim is the full sequence for contiguous HBM writeback.
            out_specs=pl.BlockSpec(
                (None, num_heads, tq, tk), lambda i: (0, 0, i, 0)
            ),
        ),
        compiler_params=pltpu.CompilerParams(
            dimension_semantics=("parallel",),
            vmem_limit_bytes=vmem_limit,
        ),
    )(pos_slopes)

    return out


def _reference(seq_len: int, num_heads: int) -> jax.Array:
    """Pure-JAX reference mirroring the PyTorch forward exactly."""
    slopes = jnp.asarray(
        [-(2.0 ** (-(8 - i))) for i in range(num_heads)], dtype=jnp.float32
    ).reshape(1, num_heads, 1, 1)
    pos = jnp.arange(seq_len)
    rel_pos = pos[None, :] - pos[:, None]
    rel_pos = -jnp.abs(rel_pos)[None, None, :, :].astype(jnp.float32)
    return rel_pos * slopes


if __name__ == "__main__":
    num_heads = 8  # matches the module's hardcoded "8" in the slope formula

    # The module's forward takes no tensors; PRNGKey kept for convention.
    _ = jax.random.PRNGKey(0)

    # Case 1: small seq — still split into 2 q-tiles (megacore-friendly grid).
    s = 64
    bias = jax.block_until_ready(alibi_bias(s, num_heads))
    ref = _reference(s, num_heads)
    assert bias.shape == (1, num_heads, s, s)
    assert bias.dtype == jnp.float32
    assert bool(jnp.array_equal(bias, ref))

    # Case 2: tight VMEM budget forces a longer 1-D q-tile grid.
    s = 512
    bias = jax.block_until_ready(
        alibi_bias(s, num_heads, max_block_bytes=1 << 20)
    )
    ref = _reference(s, num_heads)
    assert bias.shape == (1, num_heads, s, s)
    assert bool(jnp.array_equal(bias, ref))

    # Case 3: seq_len not a multiple of 128 or of the lane chunk — exercises
    # the ragged lane-tail chunk and a ragged last q-tile block.
    s = 1040
    bias = jax.block_until_ready(alibi_bias(s, num_heads))
    ref = _reference(s, num_heads)
    assert bias.shape == (1, num_heads, s, s)
    assert bool(jnp.array_equal(bias, ref))

    print("KERNEL_OK")
</pallas_src>

<mosaic_0001>
module attributes {stable_mosaic.version = 11 : i64} {
  func.func @_alibi_kernel(%arg0: i32, %arg1: memref<8xf32, #tpu.memory_space<smem>>, %arg2: memref<1x8x32x64xf32, #tpu.memory_space<vmem>>) attributes {dimension_semantics = [#tpu.dimension_semantics<parallel>], iteration_bounds = array<i64: 2>, scalar_prefetch = 0 : i64, scratch_operands = 0 : i64, tpu.core_type = #tpu.core_type<tc>, window_params = [{transform_indices = @transform_0, window_bounds = array<i64: 8>}, {transform_indices = @transform_1, window_bounds = array<i64: 1, 8, 32, 64>}]} {
    %c32_i32 = arith.constant 32 : i32
    %0 = arith.muli %arg0, %c32_i32 : i32
    %1 = tpu.iota {dimensions = array<i32: 1>} : vector<8x64xi32>
    %2 = tpu.iota {dimensions = array<i32: 0>} : vector<8x64xi32>
    %3 = arith.subi %1, %2 : vector<8x64xi32>
    %c0_i32 = arith.constant 0 : i32
    %c4_i32 = arith.constant 4 : i32
    %4 = arith.addi %c0_i32, %c4_i32 : i32
    %c1_i32 = arith.constant 1 : i32
    scf.for %arg3 = %c0_i32 to %4 step %c1_i32  : i32 {
      %c8_i32 = arith.constant 8 : i32
      %5 = arith.muli %arg3, %c8_i32 : i32
      %6 = tpu.assume_multiple %5, 8 : i32
      %7 = arith.addi %0, %6 : i32
      %c0_i32_1 = arith.constant 0 : i32
      %8 = arith.subi %c0_i32_1, %7 : i32
      %9 = vector.broadcast %8 : i32 to vector<8x64xi32>
      %10 = arith.addi %3, %9 : vector<8x64xi32>
      %11 = math.absi %10 : vector<8x64xi32>
      %12 = arith.sitofp %11 : vector<8x64xi32> to vector<8x64xf32>
      %c0 = arith.constant 0 : index
      %13 = memref.load %arg1[%c0] : memref<8xf32, #tpu.memory_space<smem>>
      %14 = vector.broadcast %13 : f32 to vector<8x64xf32>
      %15 = arith.mulf %12, %14 : vector<8x64xf32>
      %c0_2 = arith.constant 0 : index
      %c0_3 = arith.constant 0 : index
      %16 = arith.index_cast %6 : i32 to index
      %c0_4 = arith.constant 0 : index
      %17 = vector.load %arg2[%c0_2, %c0_3, %16, %c0_4] : memref<1x8x32x64xf32, #tpu.memory_space<vmem>>, vector<1x1x8x64xf32>
      %18 = vector.shape_cast %17 : vector<1x1x8x64xf32> to vector<8x64xf32>
      %19 = vector.shape_cast %15 : vector<8x64xf32> to vector<1x1x8x64xf32>
      tpu.vector_store %arg2[%c0_2, %c0_3, %16, %c0_4], %19 {strides = array<i32>} : memref<1x8x32x64xf32, #tpu.memory_space<vmem>>, vector<1x1x8x64xf32>,
      %c1 = arith.constant 1 : index
      %20 = memref.load %arg1[%c1] : memref<8xf32, #tpu.memory_space<smem>>
      %21 = vector.broadcast %20 : f32 to vector<8x64xf32>
      %22 = arith.mulf %12, %21 : vector<8x64xf32>
      %c0_5 = arith.constant 0 : index
      %c1_6 = arith.constant 1 : index
      %23 = arith.index_cast %6 : i32 to index
      %c0_7 = arith.constant 0 : index
      %24 = vector.load %arg2[%c0_5, %c1_6, %23, %c0_7] : memref<1x8x32x64xf32, #tpu.memory_space<vmem>>, vector<1x1x8x64xf32>
      %25 = vector.shape_cast %24 : vector<1x1x8x64xf32> to vector<8x64xf32>
      %26 = vector.shape_cast %22 : vector<8x64xf32> to vector<1x1x8x64xf32>
      tpu.vector_store %arg2[%c0_5, %c1_6, %23, %c0_7], %26 {strides = array<i32>} : memref<1x8x32x64xf32, #tpu.memory_space<vmem>>, vector<1x1x8x64xf32>,
      %c2 = arith.constant 2 : index
      %27 = memref.load %arg1[%c2] : memref<8xf32, #tpu.memory_space<smem>>
      %28 = vector.broadcast %27 : f32 to vector<8x64xf32>
      %29 = arith.mulf %12, %28 : vector<8x64xf32>
      %c0_8 = arith.constant 0 : index
      %c2_9 = arith.constant 2 : index
      %30 = arith.index_cast %6 : i32 to index
      %c0_10 = arith.constant 0 : index
      %31 = vector.load %arg2[%c0_8, %c2_9, %30, %c0_10] : memref<1x8x32x64xf32, #tpu.memory_space<vmem>>, vector<1x1x8x64xf32>
      %32 = vector.shape_cast %31 : vector<1x1x8x64xf32> to vector<8x64xf32>
      %33 = vector.shape_cast %29 : vector<8x64xf32> to vector<1x1x8x64xf32>
      tpu.vector_store %arg2[%c0_8, %c2_9, %30, %c0_10], %33 {strides = array<i32>} : memref<1x8x32x64xf32, #tpu.memory_space<vmem>>, vector<1x1x8x64xf32>,
      %c3 = arith.constant 3 : index
      %34 = memref.load %arg1[%c3] : memref<8xf32, #tpu.memory_space<smem>>
      %35 = vector.broadcast %34 : f32 to vector<8x64xf32>
      %36 = arith.mulf %12, %35 : vector<8x64xf32>
      %c0_11 = arith.constant 0 : index
      %c3_12 = arith.constant 3 : index
      %37 = arith.index_cast %6 : i32 to index
      %c0_13 = arith.constant 0 : index
      %38 = vector.load %arg2[%c0_11, %c3_12, %37, %c0_13] : memref<1x8x32x64xf32, #tpu.memory_space<vmem>>, vector<1x1x8x64xf32>
      %39 = vector.shape_cast %38 : vector<1x1x8x64xf32> to vector<8x64xf32>
      %40 = vector.shape_cast %36 : vector<8x64xf32> to vector<1x1x8x64xf32>
      tpu.vector_store %arg2[%c0_11, %c3_12, %37, %c0_13], %40 {strides = array<i32>} : memref<1x8x32x64xf32, #tpu.memory_space<vmem>>, vector<1x1x8x64xf32>,
      %c4 = arith.constant 4 : index
      %41 = memref.load %arg1[%c4] : memref<8xf32, #tpu.memory_space<smem>>
      %42 = vector.broadcast %41 : f32 to vector<8x64xf32>
      %43 = arith.mulf %12, %42 : vector<8x64xf32>
      %c0_14 = arith.constant 0 : index
      %c4_15 = arith.constant 4 : index
      %44 = arith.index_cast %6 : i32 to index
      %c0_16 = arith.constant 0 : index
      %45 = vector.load %arg2[%c0_14, %c4_15, %44, %c0_16] : memref<1x8x32x64xf32, #tpu.memory_space<vmem>>, vector<1x1x8x64xf32>
      %46 = vector.shape_cast %45 : vector<1x1x8x64xf32> to vector<8x64xf32>
      %47 = vector.shape_cast %43 : vector<8x64xf32> to vector<1x1x8x64xf32>
      tpu.vector_store %arg2[%c0_14, %c4_15, %44, %c0_16], %47 {strides = array<i32>} : memref<1x8x32x64xf32, #tpu.memory_space<vmem>>, vector<1x1x8x64xf32>,
      %c5 = arith.constant 5 : index
      %48 = memref.load %arg1[%c5] : memref<8xf32, #tpu.memory_space<smem>>
      %49 = vector.broadcast %48 : f32 to vector<8x64xf32>
      %50 = arith.mulf %12, %49 : vector<8x64xf32>
      %c0_17 = arith.constant 0 : index
      %c5_18 = arith.constant 5 : index
      %51 = arith.index_cast %6 : i32 to index
      %c0_19 = arith.constant 0 : index
      %52 = vector.load %arg2[%c0_17, %c5_18, %51, %c0_19] : memref<1x8x32x64xf32, #tpu.memory_space<vmem>>, vector<1x1x8x64xf32>
      %53 = vector.shape_cast %52 : vector<1x1x8x64xf32> to vector<8x64xf32>
      %54 = vector.shape_cast %50 : vector<8x64xf32> to vector<1x1x8x64xf32>
      tpu.vector_store %arg2[%c0_17, %c5_18, %51, %c0_19], %54 {strides = array<i32>} : memref<1x8x32x64xf32, #tpu.memory_space<vmem>>, vector<1x1x8x64xf32>,
      %c6 = arith.constant 6 : index
      %55 = memref.load %arg1[%c6] : memref<8xf32, #tpu.memory_space<smem>>
      %56 = vector.broadcast %55 : f32 to vector<8x64xf32>
      %57 = arith.mulf %12, %56 : vector<8x64xf32>
      %c0_20 = arith.constant 0 : index
      %c6_21 = arith.constant 6 : index
      %58 = arith.index_cast %6 : i32 to index
      %c0_22 = arith.constant 0 : index
      %59 = vector.load %arg2[%c0_20, %c6_21, %58, %c0_22] : memref<1x8x32x64xf32, #tpu.memory_space<vmem>>, vector<1x1x8x64xf32>
      %60 = vector.shape_cast %59 : vector<1x1x8x64xf32> to vector<8x64xf32>
      %61 = vector.shape_cast %57 : vector<8x64xf32> to vector<1x1x8x64xf32>
      tpu.vector_store %arg2[%c0_20, %c6_21, %58, %c0_22], %61 {strides = array<i32>} : memref<1x8x32x64xf32, #tpu.memory_space<vmem>>, vector<1x1x8x64xf32>,
      %c7 = arith.constant 7 : index
      %62 = memref.load %arg1[%c7] : memref<8xf32, #tpu.memory_space<smem>>
      %63 = vector.broadcast %62 : f32 to vector<8x64xf32>
      %64 = arith.mulf %12, %63 : vector<8x64xf32>
      %c0_23 = arith.constant 0 : index
      %c7_24 = arith.constant 7 : index
      %65 = arith.index_cast %6 : i32 to index
      %c0_25 = arith.constant 0 : index
      %66 = vector.load %arg2[%c0_23, %c7_24, %65, %c0_25] : memref<1x8x32x64xf32, #tpu.memory_space<vmem>>, vector<1x1x8x64xf32>
      %67 = vector.shape_cast %66 : vector<1x1x8x64xf32> to vector<8x64xf32>
      %68 = vector.shape_cast %64 : vector<8x64xf32> to vector<1x1x8x64xf32>
      tpu.vector_store %arg2[%c0_23, %c7_24, %65, %c0_25], %68 {strides = array<i32>} : memref<1x8x32x64xf32, #tpu.memory_space<vmem>>, vector<1x1x8x64xf32>,
    }
    %c4_i32_0 = arith.constant 4 : i32
    return
  }
  func.func @transform_0(%arg0: i32) -> i32 {
    %c0_i32 = arith.constant 0 : i32
    %c0_i32_0 = arith.constant 0 : i32
    return %c0_i32 : i32
  }
  func.func @transform_1(%arg0: i32) -> (i32, i32, i32, i32) {
    %c0_i32 = arith.constant 0 : i32
    %c0_i32_0 = arith.constant 0 : i32
    %c0_i32_1 = arith.constant 0 : i32
    %c0_i32_2 = arith.constant 0 : i32
    return %c0_i32, %c0_i32_0, %arg0, %c0_i32_1 : i32, i32, i32, i32
  }
}

</mosaic_0001>

<llo_original>
// kernel: tpu_custom_call.1
$region0: #{tpu_custom_call.1}
  #allocation0 [shape = 'u32[]', space=smem, size = 0x4, offset = 0x4, fixed_abs, tag = 'smem constant byte address 0x4 - core index']
  #allocation1 [shape = 'u32[144,128]{1,0:T(1,128)}', space=vmem, size = 0x12000, scoped, tag = 'internal scratch']
  #allocation6 [shape = 's32[]', space=sflag, size = 0x4, offset = 0, fixed_abs, tag = 'sflag constant byte address 0x0 - dummy sync flag']
  %s0 = inlined_call_operand.hbm [shape: f32[8], index: 0, kind: input, shape index: {}]
  %s1 = inlined_call_operand.hbm [shape: f32[1,8,64,64], index: 1, kind: output, shape index: {}]
  %s2 = sld [smem:[#allocation0]]
  $region48: #{tpu_custom_call.1} parent=0
    _
  %s4 = ssub.s32 1, %s2
  %s5 = scalar_select 0, %s4, %s2
  $region1: #{tpu_custom_call.1} parent=0
    #allocation2 [shape = 'u8[512]{0}', space=smem, size = 0x200, scoped, tag = 'input window, operand 0, single buffered']
    #allocation3 [shape = 's32[2]{0}', space=sflag, size = 0x8, scoped, tag = 'scoped memory for tpu_custom_call.1']
    #allocation4 [shape = 's32[2]{0}', space=sflag, size = 0x8, scoped, tag = 'scoped memory for tpu_custom_call.1']
    #allocation5 [shape = 'u8[262144]{0}', space=vmem, size = 0x40000, scoped, tag = 'output window, operand 0']
    %6 = vsyncpa [#allocation4], 0
    %7 = vsyncpa [#allocation3], 0
    %s8 = scalar_lea.sflag [#allocation3], 1
    %9 = vsyncpa %s8, 0
    loop: start=0, step=1, limit=4
    $region2: #{tpu_custom_call.1} parent=1 // loop_pre_header
      _
    $region3: #{tpu_custom_call.1} parent=1 // loop_header
      %s11 = sphi 0, %s15
      %p12 = scmp.ge.s32.totalorder %s11, 4
      %s19 = sphi 0, %s19
      %s21 = sphi 0, %s19
      %s22 = sphi 0, %s21
      %s36 = sphi 0, %s22
      %s42 = sphi 0, %s44
      %s45 = sphi 0, %s42
      %s46 = sphi 0, %s45
      %s62 = sphi 0, %s46
    $region4: #{tpu_custom_call.1} parent=1 // loop_header_branch
      %14 = sbr.rel (%p12) target = $region8
    $region5: #{tpu_custom_call.1} parent=1 // loop_body
      %s16 = ssub.s32 %s11, 1
      %s17 = ssub.s32 %s11, 2
      %s18 = sadd.s32 %s11, 1
      %s20 = sadd.s32 %s19, 1
      %p23 = scmp.eq.s32.totalorder %s11, 1
      %p24 = scmp.ne.s32.totalorder %s19, %s21
      %p25 = scmp.eq.s32.totalorder %s11, 0
      %p26 = por %p24, %p25
      %p27 = scmp.ne.s32.totalorder %s19, %s21
      %p28 = scmp.eq.s32.totalorder %s16, 1
      %p29 = por %p27, %p28
      %p30 = scmp.ne.s32.totalorder %s21, %s22
      %p31 = scmp.eq.s32.totalorder %s16, 0
      %p32 = por %p30, %p31
      %p33 = scmp.ne.s32.totalorder %s21, %s22
      %p34 = scmp.eq.s32.totalorder %s17, 1
      %p35 = por %p33, %p34
      %p37 = scmp.ne.s32.totalorder %s22, %s36
      %p38 = scmp.eq.s32.totalorder %s17, 0
      %p39 = por %p37, %p38
      %s40 = ssub.s32 %s11, %s18
      %p41 = scmp.eq.s32.totalorder %s40, 0
      %s43 = sadd.s32 %s42, 1
      %s44 = scalar_select %p41, %s42, %s43
      %p47 = pneg %p41
      %p48 = scmp.eq.s32.totalorder %s11, 1
      %p49 = por %p47, %p48
      %p50 = scmp.ne.s32.totalorder %s42, %s45
      %p51 = scmp.eq.s32.totalorder %s11, 0
      %p52 = por %p50, %p51
      %p53 = scmp.ne.s32.totalorder %s42, %s45
      %p54 = scmp.eq.s32.totalorder %s16, 1
      %p55 = por %p53, %p54
      %p56 = scmp.ne.s32.totalorder %s45, %s46
      %p57 = scmp.eq.s32.totalorder %s16, 0
      %p58 = por %p56, %p57
      %p59 = scmp.ne.s32.totalorder %s45, %s46
      %p60 = scmp.eq.s32.totalorder %s17, 1
      %p61 = por %p59, %p60
      %p63 = scmp.ne.s32.totalorder %s46, %s62
      %p64 = scmp.eq.s32.totalorder %s17, 0
      %p65 = por %p63, %p64
      %p66 = scmp.le.s32.totalorder 1, %s11
      %p67 = scmp.lt.s32.totalorder %s11, 3
      %p68 = pnand %p66, %p67
      %p69 = pneg %p68
      // Predicated region
      $region9: #{tpu_custom_call.1} parent=5 // pred_check
        _
      $region10: #{tpu_custom_call.1} parent=5 // pred_check_branch
        %71 = sbr.rel (%p68) target = $region12
      $region11: #{tpu_custom_call.1} parent=5 // pred_region
        %s72 = ssub.s32 %s11, 1
        // Predicated region
        $region13: #{tpu_custom_call.1} parent=11 // pred_check
          %p73 = pneg %p32
        $region14: #{tpu_custom_call.1} parent=11 // pred_check_branch
          %75 = sbr.rel (%p73) target = $region16
        $region15: #{tpu_custom_call.1} parent=11 // pred_region
          %s77 = ssub.s32 16, 16
          %78 = vsyncadd [#allocation4], %s77
          %81 = dma.hbm_to_smem %s0, 16, [#allocation2], [#allocation4]
        $region16: #{tpu_custom_call.1} parent=11 // pred_fallthru
          _
      $region12: #{tpu_custom_call.1} parent=5 // pred_fallthru
        _
      %p82 = scmp.lt.s32.totalorder %s11, 2
      // Predicated region
      $region17: #{tpu_custom_call.1} parent=5 // pred_check
        %p83 = pneg %p82
      $region18: #{tpu_custom_call.1} parent=5 // pred_check_branch
        %85 = sbr.rel (%p83) target = $region20
      $region19: #{tpu_custom_call.1} parent=5 // pred_region
        _
      $region20: #{tpu_custom_call.1} parent=5 // pred_fallthru
        _
      %p86 = scmp.le.s32.totalorder 1, %s11
      %p87 = scmp.lt.s32.totalorder %s11, 3
      %p88 = pnand %p86, %p87
      %p89 = pneg %p88
      // Predicated region
      $region21: #{tpu_custom_call.1} parent=5 // pred_check
        _
      $region22: #{tpu_custom_call.1} parent=5 // pred_check_branch
        %91 = sbr.rel (%p88) target = $region24
      $region23: #{tpu_custom_call.1} parent=5 // pred_region
        %s92 = ssub.s32 %s11, 1
        // Predicated region
        $region25: #{tpu_custom_call.1} parent=23 // pred_check
          %p93 = pneg %p32
        $region26: #{tpu_custom_call.1} parent=23 // pred_check_branch
          %95 = sbr.rel (%p93) target = $region28
        $region27: #{tpu_custom_call.1} parent=23 // pred_region
          %96 = dma.done [#allocation4], 16
        $region28: #{tpu_custom_call.1} parent=23 // pred_fallthru
          _
        %97 = sfence
        %p98 = pneg %p32
        %p99 = pneg %p29
        %p100 = pneg %p58
        %p101 = pneg %p55
        %s102 = sand.u32 %s45, 1
        %s103 = scalar_lea.sflag [#allocation3], %s102
        %s104 = sand.u32 %s45, 1
        %s105 = smul.addr %s104, 256
        %s106 = scalar_lea.vmem [#allocation5], %s105
        %s107 = smul.u32 4, %s16
        %s108 = smul.u32 %s16, 32
        %v109 = vlaneseq
        %v110 = vand.u32 %v109, 127
        %v111 = vlaneseq
        %v112 = vshrl.u32 %v111, 7
        %v113 = vsub.s32 %v110, %v112
        loop: start=0, step=1, limit=4
        $region29: #{tpu_custom_call.1} parent=23 // loop_pre_header
          _
        $region30: #{tpu_custom_call.1} parent=23 // loop_header
          %s115 = sphi 0, %s119
          %p116 = scmp.ge.s32.totalorder %s115, 4
        $region31: #{tpu_custom_call.1} parent=23 // loop_header_branch
          %118 = sbr.rel (%p116) target = $region35
        $region32: #{tpu_custom_call.1} parent=23 // loop_body
          %s120 = smul.u32 %s115, 8
          %s121 = sadd.s32 %s108, %s120
          %s122 = ssub.s32 0, %s121
          %v123 = vstv %s122
          %v124 = vadd.s32 %v113, %v123
          %vm125 = vcmp.lt.s32.totalorder %v124, 0
          %v126 = vsub.s32 0, %v124
          %v127 = vsel %vm125, %v126, %v124
          %v128 = vcvt.s32.f32 %v127
          %s129 = sld [smem:[#allocation2]]
          %v130 = vstv %s129
          %v131 = vmul.f32 %v128, %v130
          %s132 = scalar_lea.vmem %s106, %s120 [#allocation5]
          %vm133 = vcmask 523264
          %134 = vst.msk [vmem:[%s132] sm:$0xff] %vm133, %v131
          %s135 = sld [smem:[#allocation2 + $0x1]]
          %v136 = vstv %s135
          %v137 = vmul.f32 %v128, %v136
          %s138 = sadd.s32 %s120, 32
          %s139 = scalar_lea.vmem %s106, %s138 [#allocation5]
          %140 = vst.msk [vmem:[%s139] sm:$0xff] %vm133, %v137
          %s141 = sld [smem:[#allocation2 + $0x2]]
          %v142 = vstv %s141
          %v143 = vmul.f32 %v128, %v142
          %s144 = sadd.s32 %s120, 64
          %s145 = scalar_lea.vmem %s106, %s144 [#allocation5]
          %146 = vst.msk [vmem:[%s145] sm:$0xff] %vm133, %v143
          %s147 = sld [smem:[#allocation2 + $0x3]]
          %v148 = vstv %s147
          %v149 = vmul.f32 %v128, %v148
          %s150 = sadd.s32 %s120, 96
          %s151 = scalar_lea.vmem %s106, %s150 [#allocation5]
          %152 = vst.msk [vmem:[%s151] sm:$0xff] %vm133, %v149
          %s153 = sld [smem:[#allocation2 + $0x4]]
          %v154 = vstv %s153
          %v155 = vmul.f32 %v128, %v154
          %s156 = sadd.s32 %s120, 128
          %s157 = scalar_lea.vmem %s106, %s156 [#allocation5]
          %158 = vst.msk [vmem:[%s157] sm:$0xff] %vm133, %v155
          %s159 = sld [smem:[#allocation2 + $0x5]]
          %v160 = vstv %s159
          %v161 = vmul.f32 %v128, %v160
          %s162 = sadd.s32 %s120, 160
          %s163 = scalar_lea.vmem %s106, %s162 [#allocation5]
          %164 = vst.msk [vmem:[%s163] sm:$0xff] %vm133, %v161
          %s165 = sld [smem:[#allocation2 + $0x6]]
          %v166 = vstv %s165
          %v167 = vmul.f32 %v128, %v166
          %s168 = sadd.s32 %s120, 192
          %s169 = scalar_lea.vmem %s106, %s168 [#allocation5]
          %170 = vst.msk [vmem:[%s169] sm:$0xff] %vm133, %v167
          %s171 = sld [smem:[#allocation2 + $0x7]]
          %v172 = vstv %s171
          %v173 = vmul.f32 %v128, %v172
          %s174 = sadd.s32 %s120, 224
          %s175 = scalar_lea.vmem %s106, %s174 [#allocation5]
          %176 = vst.msk [vmem:[%s175] sm:$0xff] %vm133, %v173
        $region33: #{tpu_custom_call.1} parent=23 // loop_footer
          %s119 = sadd.s32 1, %s115
        $region34: #{tpu_custom_call.1} parent=23 // loop_footer_branch
          %114 = sbr.rel target = $region30
        $region35: #{tpu_custom_call.1} parent=23 // loop_exit
          _
        %s177 = sand.u32 %s45, 1
        %s178 = scalar_lea.sflag [#allocation3], %s177
        %s179 = sand.u32 %s45, 1
        %s180 = smul.addr %s179, 256
        %s181 = scalar_lea.vmem [#allocation5], %s180
        // Predicated region
        $region36: #{tpu_custom_call.1} parent=23 // pred_check
          %p182 = pneg %p55
        $region37: #{tpu_custom_call.1} parent=23 // pred_check_branch
          %184 = sbr.rel (%p182) target = $region39
        $region38: #{tpu_custom_call.1} parent=23 // pred_region
          #allocation7 [shape = 'u32[6]{0}', space=smem, size = 0x18, scoped, tag = 'DMA stride descriptor']
          %s185 = smul.u32 4, %s16
          %s187 = ssub.s32 4096, 4096
          %188 = vsyncadd %s178, %s187
          %s189 = smul.addr %s185, 128
          %s190 = scalar_lea.hbm %s1, %s189
          %s192 = sshll.u32 1, 14
          %s193 = sxor.u32 4294967295, %s192
          %s196 = sshll.u32 7, 18
          %s197 = sxor.u32 4294967295, %s196
          %s198 = sand.u32 0, %s197
          %s200 = sor.u32 %s198, 0
          %s201 = sshll.u32 %s181, 4
          %s202 = int_to_ptr.vmem [resolvable:$true] %s201
          %208 = sst [smem:[#allocation7]] 512
          %s209 = scalar_lea.smem [#allocation7], 1
          %210 = sst [smem:[%s209]] 1024
          %s211 = scalar_lea.smem [#allocation7], 2
          %212 = sst [smem:[%s211]] 4
          %s213 = scalar_lea.smem [#allocation7], 3
          %214 = sst [smem:[%s213]] 128
          %s215 = scalar_lea.smem [#allocation7], 4
          %216 = sst [smem:[%s215]] 128
          %s217 = scalar_lea.smem [#allocation7], 5
          %218 = sst [smem:[%s217]] 8
          %220 = dma.general %s202, 4096, %s190, %s178, 131072, [#allocation7], %s200, 0
        $region39: #{tpu_custom_call.1} parent=23 // pred_fallthru
          _
      $region24: #{tpu_custom_call.1} parent=5 // pred_fallthru
        _
      %p221 = scmp.le.s32.totalorder 2, %s11
      // Predicated region
      $region40: #{tpu_custom_call.1} parent=5 // pred_check
        %p222 = pneg %p221
      $region41: #{tpu_custom_call.1} parent=5 // pred_check_branch
        %224 = sbr.rel (%p222) target = $region43
      $region42: #{tpu_custom_call.1} parent=5 // pred_region
        %s225 = ssub.s32 %s11, 2
        // Predicated region
        $region44: #{tpu_custom_call.1} parent=42 // pred_check
          %p226 = pneg %p61
        $region45: #{tpu_custom_call.1} parent=42 // pred_check_branch
          %228 = sbr.rel (%p226) target = $region47
        $region46: #{tpu_custom_call.1} parent=42 // pred_region
          %s229 = sand.u32 %s46, 1
          %s230 = scalar_lea.sflag [#allocation3], %s229
          %s231 = sand.u32 %s46, 1
          %s232 = smul.addr %s231, 256
          %s233 = scalar_lea.vmem [#allocation5], %s232
          %234 = dma.done %s230, 4096
        $region47: #{tpu_custom_call.1} parent=42 // pred_fallthru
          _
      $region43: #{tpu_custom_call.1} parent=5 // pred_fallthru
        _
    $region6: #{tpu_custom_call.1} parent=1 // loop_footer
      %s15 = sadd.s32 1, %s11
    $region7: #{tpu_custom_call.1} parent=1 // loop_footer_branch
      %10 = sbr.rel target = $region3
    $region8: #{tpu_custom_call.1} parent=1 // loop_exit
      _
    %235 = vsyncpa [#allocation3], 1
    %s236 = scalar_lea.sflag [#allocation3], 1
    %237 = vsyncpa %s236, 1
    %238 = vsyncpa [#allocation4], 1
    %s239 = scalar_lea.sflag [#allocation4], 1
    %240 = vsyncpa %s239, 1

</llo_original>
